<compile_context>
chip_gen: v5e
topology: v5e:2x2
jax: 0.10.0
libtpu: 0.0.40
codegen_flags: <defaults>
</compile_context>

<pallas_src>
import jax
import jax.numpy as jnp
from jax import lax
from jax.experimental import pallas as pl
from jax.experimental.pallas import tpu as pltpu

EPS = 1e-5  # torch.nn.GroupNorm default


def _make_kernel(tile_n, o_pad, num_groups, cpg):
    inv_cpg = 1.0 / float(cpg)

    def kernel(x_ref, w_ref, b_ref, gamma_ref, beta_ref, o_ref):
        x = x_ref[...]                      # (TILE_N, I)
        w = w_ref[...]                      # (O_pad, I)

        # Linear: y = x @ w.T + b (MXU handles the transposed-RHS contraction).
        y = lax.dot_general(
            x, w, (((1,), (1,)), ((), ())),
            preferred_element_type=jnp.float32,
        ) + b_ref[...]                      # (TILE_N, O_pad)

        # Group-membership masks built in-kernel (VPU compares, free filler).
        # Padded channels (>= real O) fall outside every group column -> 0.
        ch = lax.broadcasted_iota(jnp.int32, (o_pad, num_groups), 0)
        gi = lax.broadcasted_iota(jnp.int32, (o_pad, num_groups), 1)
        mask = ((ch >= gi * cpg) & (ch < (gi + 1) * cpg)).astype(jnp.float32)

        gi_t = lax.broadcasted_iota(jnp.int32, (num_groups, o_pad), 0)
        ch_t = lax.broadcasted_iota(jnp.int32, (num_groups, o_pad), 1)
        mask_t = ((ch_t >= gi_t * cpg) & (ch_t < (gi_t + 1) * cpg)).astype(jnp.float32)

        # Fused reduction: one MXU push gives per-group sum and sum-of-squares.
        s12 = jnp.dot(jnp.concatenate([y, y * y], axis=0), mask,
                      preferred_element_type=jnp.float32)   # (2*TILE_N, G)
        s1 = s12[:tile_n]
        s2 = s12[tile_n:]
        mean_g = s1 * inv_cpg
        var_g = jnp.maximum(s2 * inv_cpg - mean_g * mean_g, 0.0)

        # rsqrt + affine algebra at group granularity (cuts EUP work by O/G).
        inv_g = lax.rsqrt(var_g + EPS)       # (TILE_N, G)
        a_g = inv_g
        b_g = -mean_g * inv_g

        # One broadcast matmul for both scale and shift: (2*TILE_N,G)@(G,O_pad).
        ab_c = jnp.dot(jnp.concatenate([a_g, b_g], axis=0), mask_t,
                       preferred_element_type=jnp.float32)   # (2*TILE_N, O_pad)
        a_c = ab_c[:tile_n]
        b_c = ab_c[tile_n:]

        gamma = gamma_ref[...]               # (1, O_pad)
        beta = beta_ref[...]                 # (1, O_pad)
        o_ref[...] = y * (a_c * gamma) + (b_c * gamma + beta)

    return kernel


def fc1_pub_gn_forward(x, weight, bias, gamma, beta, num_groups):
    """x: (N, I) f32; weight: (O, I); bias/gamma/beta: (O,)."""
    N, I = x.shape
    O = weight.shape[0]
    G = int(num_groups)
    assert O % G == 0
    cpg = O // G

    f32 = jnp.float32

    # Pad O to a multiple of 128 -> lane-dense output stores.
    O_pad = ((O + 127) // 128) * 128
    # Batch tile: big enough to amortize per-step overhead, multiple of 8.
    TILE_N = 256 if N >= 256 else max(8, ((N + 7) // 8) * 8)
    N_pad = ((N + TILE_N - 1) // TILE_N) * TILE_N

    x_p = jnp.zeros((N_pad, I), f32).at[:N].set(jnp.asarray(x, f32))
    w_p = jnp.zeros((O_pad, I), f32).at[:O].set(jnp.asarray(weight, f32))
    b_p = jnp.zeros((1, O_pad), f32).at[0, :O].set(jnp.asarray(bias, f32))
    g_p = jnp.zeros((1, O_pad), f32).at[0, :O].set(jnp.asarray(gamma, f32))
    be_p = jnp.zeros((1, O_pad), f32).at[0, :O].set(jnp.asarray(beta, f32))

    kernel = _make_kernel(TILE_N, O_pad, G, cpg)

    # VMEM budget estimate (double-buffered x/out, resident weight, temporaries);
    # clamp to 64 MiB so the same config fits v7x as well as v5e/v6e.
    vmem_est = 4 * (
        2 * TILE_N * I
        + 2 * TILE_N * O_pad
        + 2 * O_pad * I
        + 6 * O_pad
        + 8 * TILE_N * O_pad
    )
    vmem_limit = int(min(max(vmem_est, 32 * 1024 * 1024), 64 * 1024 * 1024))

    out = pl.pallas_call(
        kernel,
        out_shape=jax.ShapeDtypeStruct((N_pad, O_pad), f32),
        grid_spec=pltpu.PrefetchScalarGridSpec(
            num_scalar_prefetch=0,
            grid=(N_pad // TILE_N,),
            in_specs=[
                pl.BlockSpec((TILE_N, I), lambda i: (i, 0)),   # x: tiled over N
                pl.BlockSpec((O_pad, I), lambda i: (0, 0)),    # weight: resident
                pl.BlockSpec((1, O_pad), lambda i: (0, 0)),    # bias
                pl.BlockSpec((1, O_pad), lambda i: (0, 0)),    # gamma
                pl.BlockSpec((1, O_pad), lambda i: (0, 0)),    # beta
            ],
            out_specs=pl.BlockSpec((TILE_N, O_pad), lambda i: (i, 0)),
        ),
        compiler_params=pltpu.CompilerParams(
            dimension_semantics=("parallel",),
            vmem_limit_bytes=vmem_limit,
        ),
    )(x_p, w_p, b_p, g_p, be_p)

    return out[:N, :O]


def _reference(x, weight, bias, gamma, beta, num_groups):
    y = x @ weight.T + bias
    N, O = y.shape
    G = num_groups
    yg = y.reshape(N, G, O // G)
    mean = yg.mean(axis=-1, keepdims=True)
    var = yg.var(axis=-1, keepdims=True)
    yh = ((yg - mean) / jnp.sqrt(var + EPS)).reshape(N, O)
    return yh * gamma + beta


if __name__ == "__main__":
    # Small shapes implied by the module: Linear(i, o), GroupNorm(o//16, o).
    # i=32, o=32 -> num_groups = 32 // 16 = 2.  Batch N = 8.
    N, I, O = 8, 32, 32
    G = O // 16

    key = jax.random.PRNGKey(0)
    kx, kw, kb = jax.random.split(key, 3)

    x = jax.random.normal(kx, (N, I), dtype=jnp.float32)
    bound = 1.0 / (I ** 0.5)
    weight = jax.random.uniform(kw, (O, I), jnp.float32, -bound, bound)
    bias = jax.random.uniform(kb, (O,), jnp.float32, -bound, bound)
    gamma = jnp.ones((O,), jnp.float32)   # GroupNorm affine defaults
    beta = jnp.zeros((O,), jnp.float32)

    out = fc1_pub_gn_forward(x, weight, bias, gamma, beta, G)
    out = jax.block_until_ready(out)

    ref = _reference(x, weight, bias, gamma, beta, G)
    assert out.shape == ref.shape, "shape mismatch vs reference"
    assert jnp.allclose(out, ref, atol=1e-4, rtol=1e-4), "mismatch vs reference"
    print("KERNEL_OK")
</pallas_src>

<mosaic_0001>
module attributes {stable_mosaic.version = 11 : i64} {
  func.func @kernel(%arg0: i32, %arg1: memref<8x32xf32, #tpu.memory_space<vmem>>, %arg2: memref<128x32xf32, #tpu.memory_space<vmem>>, %arg3: memref<1x128xf32, #tpu.memory_space<vmem>>, %arg4: memref<1x128xf32, #tpu.memory_space<vmem>>, %arg5: memref<1x128xf32, #tpu.memory_space<vmem>>, %arg6: memref<8x128xf32, #tpu.memory_space<vmem>>) attributes {dimension_semantics = [#tpu.dimension_semantics<parallel>], iteration_bounds = array<i64: 1>, scalar_prefetch = 0 : i64, scratch_operands = 0 : i64, tpu.core_type = #tpu.core_type<tc>, window_params = [{transform_indices = @transform_0, window_bounds = array<i64: 8, 32>}, {pipeline_mode = #tpu.pipeline_mode<synchronous>, transform_indices = @transform_1, window_bounds = array<i64: 128, 32>}, {pipeline_mode = #tpu.pipeline_mode<synchronous>, transform_indices = @transform_2, window_bounds = array<i64: 1, 128>}, {pipeline_mode = #tpu.pipeline_mode<synchronous>, transform_indices = @transform_3, window_bounds = array<i64: 1, 128>}, {pipeline_mode = #tpu.pipeline_mode<synchronous>, transform_indices = @transform_4, window_bounds = array<i64: 1, 128>}, {transform_indices = @transform_5, window_bounds = array<i64: 8, 128>}]} {
    %c0 = arith.constant 0 : index
    %c0_0 = arith.constant 0 : index
    %0 = vector.load %arg1[%c0, %c0_0] : memref<8x32xf32, #tpu.memory_space<vmem>>, vector<8x32xf32>
    %c0_1 = arith.constant 0 : index
    %c0_2 = arith.constant 0 : index
    %1 = vector.load %arg2[%c0_1, %c0_2] : memref<128x32xf32, #tpu.memory_space<vmem>>, vector<128x32xf32>
    %cst = arith.constant dense<0.000000e+00> : vector<8x128xf32>
    %2 = tpu.matmul %0, %1, %cst {dimension_numbers = #tpu.dot_dimension_numbers<[1], [1], [0], [0], [0, 0, 1, 0], [], []>} : vector<8x32xf32>, vector<128x32xf32>, vector<8x128xf32> -> vector<8x128xf32>
    %c0_3 = arith.constant 0 : index
    %c0_4 = arith.constant 0 : index
    %3 = vector.load %arg3[%c0_3, %c0_4] : memref<1x128xf32, #tpu.memory_space<vmem>>, vector<1x128xf32>
    %4 = vector.broadcast %3 : vector<1x128xf32> to vector<8x128xf32>
    %5 = arith.addf %2, %4 : vector<8x128xf32>
    %6 = tpu.iota {dimensions = array<i32: 0>} : vector<128x2xi32>
    %7 = tpu.iota {dimensions = array<i32: 1>} : vector<128x2xi32>
    %c16_i32 = arith.constant 16 : i32
    %8 = vector.broadcast %c16_i32 : i32 to vector<128x2xi32>
    %9 = arith.muli %7, %8 : vector<128x2xi32>
    %10 = arith.cmpi sge, %6, %9 : vector<128x2xi32>
    %c1_i32 = arith.constant 1 : i32
    %11 = vector.broadcast %c1_i32 : i32 to vector<128x2xi32>
    %12 = arith.addi %7, %11 : vector<128x2xi32>
    %c16_i32_5 = arith.constant 16 : i32
    %13 = vector.broadcast %c16_i32_5 : i32 to vector<128x2xi32>
    %14 = arith.muli %12, %13 : vector<128x2xi32>
    %15 = arith.cmpi slt, %6, %14 : vector<128x2xi32>
    %16 = arith.andi %10, %15 : vector<128x2xi1>
    %17 = arith.extui %16 : vector<128x2xi1> to vector<128x2xi32>
    %18 = arith.sitofp %17 : vector<128x2xi32> to vector<128x2xf32>
    %19 = tpu.iota {dimensions = array<i32: 0>} : vector<2x128xi32>
    %20 = tpu.iota {dimensions = array<i32: 1>} : vector<2x128xi32>
    %c16_i32_6 = arith.constant 16 : i32
    %21 = vector.broadcast %c16_i32_6 : i32 to vector<2x128xi32>
    %22 = arith.muli %19, %21 : vector<2x128xi32>
    %23 = arith.cmpi sge, %20, %22 : vector<2x128xi32>
    %c1_i32_7 = arith.constant 1 : i32
    %24 = vector.broadcast %c1_i32_7 : i32 to vector<2x128xi32>
    %25 = arith.addi %19, %24 : vector<2x128xi32>
    %c16_i32_8 = arith.constant 16 : i32
    %26 = vector.broadcast %c16_i32_8 : i32 to vector<2x128xi32>
    %27 = arith.muli %25, %26 : vector<2x128xi32>
    %28 = arith.cmpi slt, %20, %27 : vector<2x128xi32>
    %29 = arith.andi %23, %28 : vector<2x128xi1>
    %30 = arith.extui %29 : vector<2x128xi1> to vector<2x128xi32>
    %31 = arith.sitofp %30 : vector<2x128xi32> to vector<2x128xf32>
    %32 = arith.mulf %5, %5 : vector<8x128xf32>
    %33 = tpu.concatenate %5, %32 in 0 : vector<8x128xf32>, vector<8x128xf32> -> vector<16x128xf32>
    %cst_9 = arith.constant dense<0.000000e+00> : vector<16x2xf32>
    %34 = tpu.matmul %33, %18, %cst_9 {dimension_numbers = #tpu.dot_dimension_numbers<[1], [0], [0], [1], [0, 0, 1, 1], [], []>} : vector<16x128xf32>, vector<128x2xf32>, vector<16x2xf32> -> vector<16x2xf32>
    %35 = vector.extract_strided_slice %34 {offsets = [0, 0], sizes = [8, 2], strides = [1, 1]} : vector<16x2xf32> to vector<8x2xf32>
    %36 = vector.extract_strided_slice %34 {offsets = [8, 0], sizes = [8, 2], strides = [1, 1]} : vector<16x2xf32> to vector<8x2xf32>
    %cst_10 = arith.constant 6.250000e-02 : f32
    %37 = vector.broadcast %cst_10 : f32 to vector<8x2xf32>
    %38 = arith.mulf %35, %37 : vector<8x2xf32>
    %cst_11 = arith.constant 6.250000e-02 : f32
    %39 = vector.broadcast %cst_11 : f32 to vector<8x2xf32>
    %40 = arith.mulf %36, %39 : vector<8x2xf32>
    %41 = arith.mulf %38, %38 : vector<8x2xf32>
    %42 = arith.subf %40, %41 : vector<8x2xf32>
    %cst_12 = arith.constant 0.000000e+00 : f32
    %43 = vector.broadcast %cst_12 : f32 to vector<8x2xf32>
    %44 = arith.maximumf %42, %43 : vector<8x2xf32>
    %cst_13 = arith.constant 9.99999974E-6 : f32
    %45 = vector.broadcast %cst_13 : f32 to vector<8x2xf32>
    %46 = arith.addf %44, %45 : vector<8x2xf32>
    %47 = math.rsqrt %46 : vector<8x2xf32>
    %cst_14 = arith.constant 0.000000e+00 : f32
    %48 = vector.broadcast %cst_14 : f32 to vector<8x2xf32>
    %49 = arith.subf %48, %38 : vector<8x2xf32>
    %50 = arith.mulf %49, %47 : vector<8x2xf32>
    %51 = tpu.concatenate %47, %50 in 0 : vector<8x2xf32>, vector<8x2xf32> -> vector<16x2xf32>
    %cst_15 = arith.constant dense<0.000000e+00> : vector<16x128xf32>
    %52 = tpu.matmul %51, %31, %cst_15 {dimension_numbers = #tpu.dot_dimension_numbers<[1], [0], [0], [1], [0, 0, 1, 1], [], []>} : vector<16x2xf32>, vector<2x128xf32>, vector<16x128xf32> -> vector<16x128xf32>
    %53 = vector.extract_strided_slice %52 {offsets = [0, 0], sizes = [8, 128], strides = [1, 1]} : vector<16x128xf32> to vector<8x128xf32>
    %54 = vector.extract_strided_slice %52 {offsets = [8, 0], sizes = [8, 128], strides = [1, 1]} : vector<16x128xf32> to vector<8x128xf32>
    %c0_16 = arith.constant 0 : index
    %c0_17 = arith.constant 0 : index
    %55 = vector.load %arg4[%c0_16, %c0_17] : memref<1x128xf32, #tpu.memory_space<vmem>>, vector<1x128xf32>
    %c0_18 = arith.constant 0 : index
    %c0_19 = arith.constant 0 : index
    %56 = vector.load %arg5[%c0_18, %c0_19] : memref<1x128xf32, #tpu.memory_space<vmem>>, vector<1x128xf32>
    %57 = vector.broadcast %55 : vector<1x128xf32> to vector<8x128xf32>
    %58 = arith.mulf %53, %57 : vector<8x128xf32>
    %59 = arith.mulf %5, %58 : vector<8x128xf32>
    %60 = vector.broadcast %55 : vector<1x128xf32> to vector<8x128xf32>
    %61 = arith.mulf %54, %60 : vector<8x128xf32>
    %62 = vector.broadcast %56 : vector<1x128xf32> to vector<8x128xf32>
    %63 = arith.addf %61, %62 : vector<8x128xf32>
    %64 = arith.addf %59, %63 : vector<8x128xf32>
    %c0_20 = arith.constant 0 : index
    %c0_21 = arith.constant 0 : index
    %65 = vector.load %arg6[%c0_20, %c0_21] : memref<8x128xf32, #tpu.memory_space<vmem>>, vector<8x128xf32>
    tpu.vector_store %arg6[%c0_20, %c0_21], %64 {strides = array<i32>} : memref<8x128xf32, #tpu.memory_space<vmem>>, vector<8x128xf32>,
    return
  }
  func.func @transform_0(%arg0: i32) -> (i32, i32) {
    %c0_i32 = arith.constant 0 : i32
    %c0_i32_0 = arith.constant 0 : i32
    return %arg0, %c0_i32 : i32, i32
  }
  func.func @transform_1(%arg0: i32) -> (i32, i32) {
    %c0_i32 = arith.constant 0 : i32
    %c0_i32_0 = arith.constant 0 : i32
    %c0_i32_1 = arith.constant 0 : i32
    return %c0_i32, %c0_i32_0 : i32, i32
  }
  func.func @transform_2(%arg0: i32) -> (i32, i32) {
    %c0_i32 = arith.constant 0 : i32
    %c0_i32_0 = arith.constant 0 : i32
    %c0_i32_1 = arith.constant 0 : i32
    return %c0_i32, %c0_i32_0 : i32, i32
  }
  func.func @transform_3(%arg0: i32) -> (i32, i32) {
    %c0_i32 = arith.constant 0 : i32
    %c0_i32_0 = arith.constant 0 : i32
    %c0_i32_1 = arith.constant 0 : i32
    return %c0_i32, %c0_i32_0 : i32, i32
  }
  func.func @transform_4(%arg0: i32) -> (i32, i32) {
    %c0_i32 = arith.constant 0 : i32
    %c0_i32_0 = arith.constant 0 : i32
    %c0_i32_1 = arith.constant 0 : i32
    return %c0_i32, %c0_i32_0 : i32, i32
  }
  func.func @transform_5(%arg0: i32) -> (i32, i32) {
    %c0_i32 = arith.constant 0 : i32
    %c0_i32_0 = arith.constant 0 : i32
    return %arg0, %c0_i32 : i32, i32
  }
}

</mosaic_0001>

<llo_original>
// kernel: tpu_custom_call.1
$region0: #{tpu_custom_call.1}
  #allocation0 [shape = 'u32[]', space=smem, size = 0x4, offset = 0x4, fixed_abs, tag = 'smem constant byte address 0x4 - core index']
  #allocation1 [shape = 'u32[72,128]{1,0:T(1,128)}', space=vmem, size = 0x9000, scoped, tag = 'internal scratch']
  %s0 = inlined_call_operand.vmem [shape: f32[8,32], index: 0, kind: input, shape index: {}]
  %s1 = inlined_call_operand.vmem [shape: f32[128,32], index: 1, kind: input, shape index: {}]
  %s2 = inlined_call_operand.vmem [shape: f32[1,128], index: 2, kind: input, shape index: {}]
  %s3 = inlined_call_operand.vmem [shape: f32[1,128], index: 3, kind: input, shape index: {}]
  %s4 = inlined_call_operand.vmem [shape: f32[1,128], index: 4, kind: input, shape index: {}]
  %s5 = inlined_call_operand.hbm [shape: f32[8,128], index: 5, kind: output, shape index: {}]
  %s6 = sld [smem:[#allocation0]]
  $region30: #{tpu_custom_call.1} parent=0
    _
  %s8 = ssub.s32 1, %s6
  %s9 = scalar_select 0, %s8, %s6
  $region1: #{tpu_custom_call.1} parent=0
    #allocation2 [shape = 'u8[4096]{0}', space=vmem, size = 0x1000, scoped, tag = 'output window, operand 0, single buffered']
    #allocation3 [shape = 's32[1]{0}', space=sflag, size = 0x4, scoped, tag = 'scoped memory for tpu_custom_call.1']
    %10 = vsyncpa [#allocation3], 0
    // Predicated region
    $region2: #{tpu_custom_call.1} parent=1 // pred_check
      _
    $region3: #{tpu_custom_call.1} parent=1 // pred_check_branch
      %12 = sbr.rel (0) target = $region5
    $region4: #{tpu_custom_call.1} parent=1 // pred_region
      _
    $region5: #{tpu_custom_call.1} parent=1 // pred_fallthru
      _
    // Predicated region
    $region6: #{tpu_custom_call.1} parent=1 // pred_check
      _
    $region7: #{tpu_custom_call.1} parent=1 // pred_check_branch
      %14 = sbr.rel (0) target = $region9
    $region8: #{tpu_custom_call.1} parent=1 // pred_region
      _
    $region9: #{tpu_custom_call.1} parent=1 // pred_fallthru
      _
    // Predicated region
    $region10: #{tpu_custom_call.1} parent=1 // pred_check
      _
    $region11: #{tpu_custom_call.1} parent=1 // pred_check_branch
      %16 = sbr.rel (0) target = $region13
    $region12: #{tpu_custom_call.1} parent=1 // pred_region
      _
    $region13: #{tpu_custom_call.1} parent=1 // pred_fallthru
      _
    // Predicated region
    $region14: #{tpu_custom_call.1} parent=1 // pred_check
      _
    $region15: #{tpu_custom_call.1} parent=1 // pred_check_branch
      %18 = sbr.rel (0) target = $region17
    $region16: #{tpu_custom_call.1} parent=1 // pred_region
      _
    $region17: #{tpu_custom_call.1} parent=1 // pred_fallthru
      _
    // Predicated region
    $region18: #{tpu_custom_call.1} parent=1 // pred_check
      _
    $region19: #{tpu_custom_call.1} parent=1 // pred_check_branch
      %20 = sbr.rel (0) target = $region21
    $region20: #{tpu_custom_call.1} parent=1 // pred_region
      _
    $region21: #{tpu_custom_call.1} parent=1 // pred_fallthru
      _
    %v21 = vld [vmem:[%s0] sm:$0xff]
    %v22 = vld [vmem:[%s1] sm:$0xff]
    %v23 = vld [vmem:[%s1 + $0x8] sm:$0xff]
    %v24 = vld [vmem:[%s1 + $0x10] sm:$0xff]
    %v25 = vld [vmem:[%s1 + $0x18] sm:$0xff]
    %v26 = vld [vmem:[%s1 + $0x20] sm:$0xff]
    %v27 = vld [vmem:[%s1 + $0x28] sm:$0xff]
    %v28 = vld [vmem:[%s1 + $0x30] sm:$0xff]
    %v29 = vld [vmem:[%s1 + $0x38] sm:$0xff]
    %v30 = vld [vmem:[%s1 + $0x40] sm:$0xff]
    %v31 = vld [vmem:[%s1 + $0x48] sm:$0xff]
    %v32 = vld [vmem:[%s1 + $0x50] sm:$0xff]
    %v33 = vld [vmem:[%s1 + $0x58] sm:$0xff]
    %v34 = vld [vmem:[%s1 + $0x60] sm:$0xff]
    %v35 = vld [vmem:[%s1 + $0x68] sm:$0xff]
    %v36 = vld [vmem:[%s1 + $0x70] sm:$0xff]
    %v37 = vld [vmem:[%s1 + $0x78] sm:$0xff]
    %v38 = vld [vmem:[%s2] sm:$0x1]
    %v40 = vperm.slane %v38, 0
    %vm42 = vcmask 261120
    %v44 = vsel %vm42, %v21, 0
    %v47 = vsel %vm42, %v22, 0
    %v50 = vsel %vm42, %v23, 0
    %v53 = vsel %vm42, %v24, 0
    %v56 = vsel %vm42, %v25, 0
    %v59 = vsel %vm42, %v26, 0
    %v62 = vsel %vm42, %v27, 0
    %v65 = vsel %vm42, %v28, 0
    %v68 = vsel %vm42, %v29, 0
    %v71 = vsel %vm42, %v30, 0
    %v74 = vsel %vm42, %v31, 0
    %v77 = vsel %vm42, %v32, 0
    %v80 = vsel %vm42, %v33, 0
    %v83 = vsel %vm42, %v34, 0
    %v86 = vsel %vm42, %v35, 0
    %v89 = vsel %vm42, %v36, 0
    %v92 = vsel %vm42, %v37, 0
    %94 = vmatpush.xpose.msra.mxu0 %v92
    %95 = vmatpush.xpose.msra.mxu0 %v89
    %96 = vmatpush.xpose.msra.mxu0 %v86
    %97 = vmatpush.xpose.msra.mxu0 %v83
    %98 = vmatpush.xpose.msra.mxu0 %v80
    %99 = vmatpush.xpose.msra.mxu0 %v77
    %100 = vmatpush.xpose.msra.mxu0 %v74
    %101 = vmatpush.xpose.msra.mxu0 %v71
    %102 = vmatpush.xpose.msra.mxu0 %v68
    %103 = vmatpush.xpose.msra.mxu0 %v65
    %104 = vmatpush.xpose.msra.mxu0 %v62
    %105 = vmatpush.xpose.msra.mxu0 %v59
    %106 = vmatpush.xpose.msra.mxu0 %v56
    %107 = vmatpush.xpose.msra.mxu0 %v53
    %108 = vmatpush.xpose.msra.mxu0 %v50
    %109 = vmatpush.xpose.msra.mxu0 %v47
    %110 = vmatmul.f32.gmra.mxu0 %v44
    %v111 = vpop.f32.mrf.mxu0
    %v112 = vadd.f32 %v40, %v111
    %113 = vdwg.mxu0
    %v114 = vlaneseq
    %v115 = vshrl.u32 %v114, 7
    %v116 = vadd.s32 %v115, 8
    %v117 = vadd.s32 %v115, 16
    %v118 = vadd.s32 %v115, 24
    %v119 = vadd.s32 %v115, 32
    %v120 = vadd.s32 %v115, 40
    %v121 = vadd.s32 %v115, 48
    %v122 = vadd.s32 %v115, 56
    %v123 = vadd.s32 %v115, 64
    %v124 = vadd.s32 %v115, 72
    %v125 = vadd.s32 %v115, 80
    %v126 = vadd.s32 %v115, 88
    %v127 = vadd.s32 %v115, 96
    %v128 = vadd.s32 %v115, 104
    %v129 = vadd.s32 %v115, 112
    %v130 = vadd.s32 %v115, 120
    %v131 = vlaneseq
    %v132 = vand.u32 %v131, 127
    %v133 = vmul.u32 %v132, 16
    %vm134 = vcmp.ge.s32.totalorder %v115, %v133
    %vm135 = vcmp.ge.s32.totalorder %v116, %v133
    %vm136 = vcmp.ge.s32.totalorder %v117, %v133
    %vm137 = vcmp.ge.s32.totalorder %v118, %v133
    %vm138 = vcmp.ge.s32.totalorder %v119, %v133
    %vm139 = vcmp.ge.s32.totalorder %v120, %v133
    %vm140 = vcmp.ge.s32.totalorder %v121, %v133
    %vm141 = vcmp.ge.s32.totalorder %v122, %v133
    %vm142 = vcmp.ge.s32.totalorder %v123, %v133
    %vm143 = vcmp.ge.s32.totalorder %v124, %v133
    %vm144 = vcmp.ge.s32.totalorder %v125, %v133
    %vm145 = vcmp.ge.s32.totalorder %v126, %v133
    %vm146 = vcmp.ge.s32.totalorder %v127, %v133
    %vm147 = vcmp.ge.s32.totalorder %v128, %v133
    %vm148 = vcmp.ge.s32.totalorder %v129, %v133
    %vm149 = vcmp.ge.s32.totalorder %v130, %v133
    %v150 = vadd.s32 %v132, 1
    %v151 = vmul.u32 %v150, 16
    %vm152 = vcmp.lt.s32.totalorder %v115, %v151
    %vm153 = vcmp.lt.s32.totalorder %v116, %v151
    %vm154 = vcmp.lt.s32.totalorder %v117, %v151
    %vm155 = vcmp.lt.s32.totalorder %v118, %v151
    %vm156 = vcmp.lt.s32.totalorder %v119, %v151
    %vm157 = vcmp.lt.s32.totalorder %v120, %v151
    %vm158 = vcmp.lt.s32.totalorder %v121, %v151
    %vm159 = vcmp.lt.s32.totalorder %v122, %v151
    %vm160 = vcmp.lt.s32.totalorder %v123, %v151
    %vm161 = vcmp.lt.s32.totalorder %v124, %v151
    %vm162 = vcmp.lt.s32.totalorder %v125, %v151
    %vm163 = vcmp.lt.s32.totalorder %v126, %v151
    %vm164 = vcmp.lt.s32.totalorder %v127, %v151
    %vm165 = vcmp.lt.s32.totalorder %v128, %v151
    %vm166 = vcmp.lt.s32.totalorder %v129, %v151
    %vm167 = vcmp.lt.s32.totalorder %v130, %v151
    %vm168 = vmand %vm134, %vm152
    %vm169 = vmand %vm135, %vm153
    %vm170 = vmand %vm136, %vm154
    %vm171 = vmand %vm137, %vm155
    %vm172 = vmand %vm138, %vm156
    %vm173 = vmand %vm139, %vm157
    %vm174 = vmand %vm140, %vm158
    %vm175 = vmand %vm141, %vm159
    %vm176 = vmand %vm142, %vm160
    %vm177 = vmand %vm143, %vm161
    %vm178 = vmand %vm144, %vm162
    %vm179 = vmand %vm145, %vm163
    %vm180 = vmand %vm146, %vm164
    %vm181 = vmand %vm147, %vm165
    %vm182 = vmand %vm148, %vm166
    %vm183 = vmand %vm149, %vm167
    %v184 = vsel %vm168, 1, 0
    %v185 = vsel %vm169, 1, 0
    %v186 = vsel %vm170, 1, 0
    %v187 = vsel %vm171, 1, 0
    %v188 = vsel %vm172, 1, 0
    %v189 = vsel %vm173, 1, 0
    %v190 = vsel %vm174, 1, 0
    %v191 = vsel %vm175, 1, 0
    %v192 = vsel %vm176, 1, 0
    %v193 = vsel %vm177, 1, 0
    %v194 = vsel %vm178, 1, 0
    %v195 = vsel %vm179, 1, 0
    %v196 = vsel %vm180, 1, 0
    %v197 = vsel %vm181, 1, 0
    %v198 = vsel %vm182, 1, 0
    %v199 = vsel %vm183, 1, 0
    %v200 = vcvt.s32.f32 %v184
    %v201 = vcvt.s32.f32 %v185
    %v202 = vcvt.s32.f32 %v186
    %v203 = vcvt.s32.f32 %v187
    %v204 = vcvt.s32.f32 %v188
    %v205 = vcvt.s32.f32 %v189
    %v206 = vcvt.s32.f32 %v190
    %v207 = vcvt.s32.f32 %v191
    %v208 = vcvt.s32.f32 %v192
    %v209 = vcvt.s32.f32 %v193
    %v210 = vcvt.s32.f32 %v194
    %v211 = vcvt.s32.f32 %v195
    %v212 = vcvt.s32.f32 %v196
    %v213 = vcvt.s32.f32 %v197
    %v214 = vcvt.s32.f32 %v198
    %v215 = vcvt.s32.f32 %v199
    %v216 = vmul.u32 %v115, 16
    %vm217 = vcmp.ge.s32.totalorder %v132, %v216
    %v218 = vadd.s32 %v115, 1
    %v219 = vmul.u32 %v218, 16
    %vm220 = vcmp.lt.s32.totalorder %v132, %v219
    %vm221 = vmand %vm217, %vm220
    %v222 = vsel %vm221, 1, 0
    %v223 = vcvt.s32.f32 %v222
    %v224 = vmul.f32 %v112, %v112
    %225 = vmatpush.msra.mxu0 %v215
    %226 = vmatpush.msra.mxu0 %v214
    %227 = vmatpush.msra.mxu0 %v213
    %228 = vmatpush.msra.mxu0 %v212
    %229 = vmatpush.msra.mxu0 %v211
    %230 = vmatpush.msra.mxu0 %v210
    %231 = vmatpush.msra.mxu0 %v209
    %232 = vmatpush.msra.mxu0 %v208
    %233 = vmatpush.msra.mxu0 %v207
    %234 = vmatpush.msra.mxu0 %v206
    %235 = vmatpush.msra.mxu0 %v205
    %236 = vmatpush.msra.mxu0 %v204
    %237 = vmatpush.msra.mxu0 %v203
    %238 = vmatpush.msra.mxu0 %v202
    %239 = vmatpush.msra.mxu0 %v201
    %240 = vmatpush.msra.mxu0 %v200
    %241 = vmatmul.f32.gmra.mxu0 %v112
    %v242 = vpop.f32.mrf.mxu0
    %v243 = vadd.f32 0.0, %v242
    %244 = vmatmul.f32.gmra.mxu0 %v224
    %v245 = vpop.f32.mrf.mxu0
    %v246 = vadd.f32 0.0, %v245
    %247 = vdwg.mxu0
    %v248 = vmul.f32 %v243, 0.0625
    %v249 = vmul.f32 %v246, 0.0625
    %v250 = vmul.f32 %v248, %v248
    %v251 = vsub.f32 %v249, %v250
    %v252 = vmax.f32 %v251, 0.0
    %v253 = vadd.f32 %v252, 1e-05
    %v254 = vrsqrt.pop %v253
    %v255 = vmul.f32 %v254, %v253
    %v256 = vmul.f32 %v255, %v254
    %v257 = vmul.f32 0.5, %v256
    %v258 = vsub.f32 1.5, %v257
    %v259 = vmul.f32 %v254, %v258
    %vm260 = vweird.f32 %v253
    %vm261 = vweird.f32 %v254
    %vm262 = vmor %vm260, %vm261
    %v263 = vsel %vm262, %v254, %v259
    %v264 = vsub.f32 0.0, %v248
    %v265 = vmul.f32 %v264, %v263
    %vm266 = vcmask 15360
    %v268 = vsel %vm266, %v263, 0
    %v271 = vsel %vm266, %v265, 0
    %vm273 = vcmask 1041408
    %v275 = vsel %vm273, %v223, 0
    %277 = vmatpush.msra.mxu0 0.0
    %278 = vmatpush.msra.mxu0 0.0
    %279 = vmatpush.msra.mxu0 0.0
    %280 = vmatpush.msra.mxu0 0.0
    %281 = vmatpush.msra.mxu0 0.0
    %282 = vmatpush.msra.mxu0 0.0
    %283 = vmatpush.msra.mxu0 0.0
    %284 = vmatpush.msra.mxu0 0.0
    %285 = vmatpush.msra.mxu0 0.0
    %286 = vmatpush.msra.mxu0 0.0
    %287 = vmatpush.msra.mxu0 0.0
    %288 = vmatpush.msra.mxu0 0.0
    %289 = vmatpush.msra.mxu0 0.0
    %290 = vmatpush.msra.mxu0 0.0
    %291 = vmatpush.msra.mxu0 0.0
    %292 = vmatpush.msra.mxu0 %v275
    %293 = vmatmul.f32.gmra.mxu0 %v268
    %v294 = vpop.f32.mrf.mxu0
    %v295 = vadd.f32 0.0, %v294
    %296 = vmatmul.f32.gmra.mxu0 %v271
    %v297 = vpop.f32.mrf.mxu0
    %v298 = vadd.f32 0.0, %v297
    %299 = vdwg.mxu0
    %v300 = vld [vmem:[%s3] sm:$0x1]
    %v301 = vld [vmem:[%s4] sm:$0x1]
    %v303 = vperm.slane %v300, 0
    %v305 = vmul.f32 %v295, %v303
    %v306 = vmul.f32 %v112, %v305
    %v307 = vmul.f32 %v298, %v303
    %v309 = vperm.slane %v301, 0
    %v311 = vadd.f32 %v307, %v309
    %v312 = vadd.f32 %v306, %v311
    %313 = vst [vmem:[#allocation2] sm:$0xff] %v312
    // Predicated region
    $region22: #{tpu_custom_call.1} parent=1 // pred_check
      _
    $region23: #{tpu_custom_call.1} parent=1 // pred_check_branch
      %315 = sbr.rel (0) target = $region25
    $region24: #{tpu_custom_call.1} parent=1 // pred_region
      %317 = vsyncadd [#allocation3], 0
      %s319 = sshll.u32 [#allocation2], 4
      %s320 = int_to_ptr.vmem [resolvable:$true] %s319
      %s321 = sshll.u32 %s5, 4
      %s322 = int_to_ptr.hbm [resolvable:$true] %s321
      %324 = dma.vmem_to_hbm [thread:$0]  %s320, 128, %s322, [#allocation3]
    $region25: #{tpu_custom_call.1} parent=1 // pred_fallthru
      _
    // Predicated region
    $region26: #{tpu_custom_call.1} parent=1 // pred_check
      _
    $region27: #{tpu_custom_call.1} parent=1 // pred_check_branch
      %326 = sbr.rel (0) target = $region29
    $region28: #{tpu_custom_call.1} parent=1 // pred_region
      %328 = dma.done [#allocation3], 128
    $region29: #{tpu_custom_call.1} parent=1 // pred_fallthru
      _
    %329 = vsyncpa [#allocation3], 1

</llo_original>
